<compile_context>
chip_gen: v7x
topology: tpu7x:2x2x1
jax: 0.10.0
libtpu: 0.0.40
codegen_flags: <defaults>
</compile_context>

<pallas_src>
import math

import jax
import jax.numpy as jnp
from jax import lax
from jax.experimental import pallas as pl
from jax.experimental.pallas import tpu as pltpu

# ----- model hyper-parameters (small, consistent with the module) -----
BATCH    = 2
SEQ      = 8
D_MODEL  = 32
N_HEADS  = 4
D_FFN    = 64
HEAD_DIM = D_MODEL // N_HEADS
EPS      = 1e-6

QKV_PAD   = 128               # 3*D_MODEL = 96 zero-padded to a full 128-lane tile
MXU_DTYPE = jnp.bfloat16      # matmul-operand dtype (f32 accumulation everywhere)


def _rmsnorm(x, w):
    # x: (N, D) f32, w: (1, D) f32 -- all elementwise math stays f32.
    var = jnp.mean(x * x, axis=-1, keepdims=True)
    return x * lax.rsqrt(var + EPS) * w


def block_kernel(x_ref, wqkv_ref, bqkv_ref, wo_ref, bo_ref,
                 anorm_ref, fnorm_ref, w13_ref, w2_ref, hmask_ref, o_ref):
    x = x_ref[...].astype(jnp.float32)                         # (N, D) = (16, 32)

    # ---------------- attention branch ----------------
    h = _rmsnorm(x, anorm_ref[...])                            # (N, D) f32
    # wqkv_ref: (D, 128) pre-transposed, Q columns pre-scaled by 1/sqrt(hd),
    # zero-padded 96 -> 128 so the projection output is one full lane tile.
    qkv = jnp.dot(h.astype(MXU_DTYPE), wqkv_ref[...],
                  preferred_element_type=jnp.float32) + bqkv_ref[...]   # (N, 128)
    q = qkv[:, 0 * D_MODEL:1 * D_MODEL]                        # (N, D) f32, pre-scaled
    k = qkv[:, 1 * D_MODEL:2 * D_MODEL]
    v = qkv[:, 2 * D_MODEL:3 * D_MODEL]

    hmask = hmask_ref[...]                                     # (D, D) f32, 1 iff row//hd == col//hd
    k_t = k.T                                                  # (D, N): single small XLU transpose

    # Heads stay in the lane dimension: block-diagonal packing of K^T / V turns
    # the per-head score and PV contractions into one (S,D)x(D,D) matmul each,
    # and the per-head softmax denominators into a segmented sum via hmask.
    ctx_parts = []
    for b in range(BATCH):                                     # B = 2, fully unrolled
        rows = slice(b * SEQ, (b + 1) * SEQ)
        q_b = q[rows, :].astype(MXU_DTYPE)                     # (S, D)
        # K_bd[d, h*hd + j] = k[b*S+j, d] if d//hd == h else 0
        k_bd = (jnp.tile(k_t[:, rows], (1, N_HEADS)) * hmask).astype(MXU_DTYPE)  # (D, D)
        # V_bd[h*hd + j, c] = v[b*S+j, c] if c//hd == h else 0
        v_bd = (jnp.tile(v[rows, :], (N_HEADS, 1)) * hmask).astype(MXU_DTYPE)    # (D, D)

        s = jnp.dot(q_b, k_bd, preferred_element_type=jnp.float32)  # (S, D): lane group h = head-h scores
        # Row-global max is an exact softmax shift (a per-head max is not needed
        # for correctness) and is numerically safe at these score magnitudes.
        s = s - jnp.max(s, axis=-1, keepdims=True)
        p = jnp.exp(s)
        # Per-head sums, broadcast within each 8-lane head group, via the
        # block-diagonal ones mask (kept f32 so the denominator stays exact).
        denom = jnp.dot(p, hmask, preferred_element_type=jnp.float32)
        p = p * pl.reciprocal(denom, approx=True)
        ctx_parts.append(jnp.dot(p.astype(MXU_DTYPE), v_bd,
                                 preferred_element_type=jnp.float32))  # (S, D), already (token, head*hd)
    ctx = jnp.concatenate(ctx_parts, axis=0)                   # (N, D)

    attn = jnp.dot(ctx.astype(MXU_DTYPE), wo_ref[...],
                   preferred_element_type=jnp.float32) + bo_ref[...]
    x = x + attn                                               # residual (f32)

    # ---------------- FFN branch (SwiGLU MLP3) ----------------
    h2 = _rmsnorm(x, fnorm_ref[...])
    # Fused gate/up projection: one (N, D) x (D, 2F) matmul -> (16, 128) tile.
    gu = jnp.dot(h2.astype(MXU_DTYPE), w13_ref[...],
                 preferred_element_type=jnp.float32)
    gated = jax.nn.silu(gu[:, :D_FFN]) * gu[:, D_FFN:]
    ff = jnp.dot(gated.astype(MXU_DTYPE), w2_ref[...],
                 preferred_element_type=jnp.float32)
    o_ref[...] = (x + ff).astype(o_ref.dtype)                  # residual + store


@jax.jit
def block_forward(x, kp):
    B, S, D = x.shape
    x_flat = x.reshape(B * S, D)          # fuse batch: one grid-free kernel invocation
    vmem = pl.BlockSpec(memory_space=pltpu.MemorySpace.VMEM)
    out = pl.pallas_call(
        block_kernel,
        out_shape=jax.ShapeDtypeStruct((B * S, D), x.dtype),
        # no grid: whole problem (< 50 KiB) resident; weights DMA'd exactly once.
        in_specs=[vmem] * 10,
        out_specs=vmem,
    )(x_flat, kp["wqkv_t"], kp["bqkv"], kp["wo_t"], kp["bo"],
      kp["w_anorm"], kp["w_fnorm"], kp["w13_t"], kp["w2_t"], kp["head_mask"])
    return out.reshape(B, S, D)


# ----------------- parameters -----------------
def init_params(key):
    """Logical (PyTorch-layout) parameters."""
    ks = jax.random.split(key, 8)
    scale = 0.05
    return {
        "wqkv": scale * jax.random.normal(ks[0], (3 * D_MODEL, D_MODEL), jnp.float32),
        "bqkv": scale * jax.random.normal(ks[1], (3 * D_MODEL,), jnp.float32),
        "wo":   scale * jax.random.normal(ks[2], (D_MODEL, D_MODEL), jnp.float32),
        "bo":   jnp.zeros((D_MODEL,), jnp.float32),
        "w_anorm": 1.0 + 0.1 * jax.random.normal(ks[3], (D_MODEL,), jnp.float32),
        "w_fnorm": 1.0 + 0.1 * jax.random.normal(ks[4], (D_MODEL,), jnp.float32),
        "w1": scale * jax.random.normal(ks[5], (D_FFN, D_MODEL), jnp.float32),
        "w3": scale * jax.random.normal(ks[6], (D_FFN, D_MODEL), jnp.float32),
        "w2": scale * jax.random.normal(ks[7], (D_MODEL, D_FFN), jnp.float32),
    }


def prepare_params(p, matmul_dtype=MXU_DTYPE):
    """One-time host-side prep: transpose weights, fold 1/sqrt(hd) into Q, pad
    QKV to 128 lanes, fuse gate/up, build the block-diagonal head mask, cast
    matmul weights to the MXU dtype. Biases / norm weights stay f32."""
    scale = 1.0 / math.sqrt(HEAD_DIM)
    wqkv = p["wqkv"].at[:D_MODEL, :].multiply(scale)     # fold softmax scale into Q rows
    bqkv = p["bqkv"].at[:D_MODEL].multiply(scale)
    wqkv_t = jnp.zeros((D_MODEL, QKV_PAD), matmul_dtype)
    wqkv_t = wqkv_t.at[:, :3 * D_MODEL].set(wqkv.T.astype(matmul_dtype))
    bqkv_p = jnp.zeros((1, QKV_PAD), jnp.float32).at[0, :3 * D_MODEL].set(bqkv)
    grp = jnp.arange(D_MODEL) // HEAD_DIM
    head_mask = (grp[:, None] == grp[None, :]).astype(jnp.float32)   # (D, D) block-diag ones
    return {
        "wqkv_t": wqkv_t,                                 # (D, 128), zero-padded
        "bqkv":   bqkv_p,                                 # (1, 128)
        "wo_t":   p["wo"].T.astype(matmul_dtype),         # (D, D)
        "bo":     p["bo"].reshape(1, D_MODEL),
        "w_anorm": p["w_anorm"].reshape(1, D_MODEL),
        "w_fnorm": p["w_fnorm"].reshape(1, D_MODEL),
        "w13_t":  jnp.concatenate([p["w1"].T, p["w3"].T], axis=1).astype(matmul_dtype),  # (D, 2F) = (32,128)
        "w2_t":   p["w2"].T.astype(matmul_dtype),         # (F, D)
        "head_mask": head_mask,                           # (D, D) f32
    }


# ----------------- pure-JAX f32 reference (module semantics) -----------------
def reference_forward(x, p):
    def rms(v, w):
        return v * lax.rsqrt(jnp.mean(v * v, -1, keepdims=True) + EPS) * w
    B, S, D = x.shape
    h = rms(x, p["w_anorm"])
    qkv = jnp.einsum("bsd,ed->bse", h, p["wqkv"]) + p["bqkv"]
    q, k, v = jnp.split(qkv, 3, axis=-1)

    def heads(t):
        return t.reshape(B, S, N_HEADS, HEAD_DIM).transpose(0, 2, 1, 3)

    qh, kh, vh = heads(q), heads(k), heads(v)
    s = jnp.einsum("bhqd,bhkd->bhqk", qh, kh) / math.sqrt(HEAD_DIM)
    pm = jax.nn.softmax(s, axis=-1)
    o = jnp.einsum("bhqk,bhkd->bhqd", pm, vh).transpose(0, 2, 1, 3).reshape(B, S, D)
    o = jnp.einsum("bsd,ed->bse", o, p["wo"]) + p["bo"]
    x = x + o
    h2 = rms(x, p["w_fnorm"])
    g = jnp.einsum("bsd,fd->bsf", h2, p["w1"])
    u = jnp.einsum("bsd,fd->bsf", h2, p["w3"])
    ff = jnp.einsum("bsf,df->bsd", jax.nn.silu(g) * u, p["w2"])
    return x + ff


if __name__ == "__main__":
    key = jax.random.PRNGKey(0)
    kx, kp = jax.random.split(key)
    x = jax.random.normal(kx, (BATCH, SEQ, D_MODEL), jnp.float32)
    params = init_params(kp)
    kernel_params = prepare_params(params)

    out = jax.block_until_ready(block_forward(x, kernel_params))
    ref = reference_forward(x, params)

    assert out.shape == (BATCH, SEQ, D_MODEL)
    max_err = float(jnp.max(jnp.abs(out - ref)))
    # Kernel uses bf16 MXU operands + approx-reciprocal softmax; expected
    # deviation from the pure-f32 reference is ~1e-3, while any structural bug
    # (wrong block-diag packing, missing residual, bad softmax grouping) is
    # orders of magnitude larger — so 1e-2 is a meaningful correctness check.
    assert jnp.allclose(out, ref, atol=1e-2, rtol=1e-2), (
        f"mismatch vs JAX reference (max abs err {max_err:.3e})")

    print("KERNEL_OK")
</pallas_src>

<mosaic_0001>
module attributes {stable_mosaic.version = 11 : i64} {
  func.func @block_kernel(%arg0: memref<16x32xf32, #tpu.memory_space<vmem>>, %arg1: memref<32x128xbf16, #tpu.memory_space<vmem>>, %arg2: memref<1x128xf32, #tpu.memory_space<vmem>>, %arg3: memref<32x32xbf16, #tpu.memory_space<vmem>>, %arg4: memref<1x32xf32, #tpu.memory_space<vmem>>, %arg5: memref<1x32xf32, #tpu.memory_space<vmem>>, %arg6: memref<1x32xf32, #tpu.memory_space<vmem>>, %arg7: memref<32x128xbf16, #tpu.memory_space<vmem>>, %arg8: memref<64x32xbf16, #tpu.memory_space<vmem>>, %arg9: memref<32x32xf32, #tpu.memory_space<vmem>>, %arg10: memref<16x32xf32, #tpu.memory_space<vmem>>) attributes {dimension_semantics = [], scalar_prefetch = 0 : i64, scratch_operands = 0 : i64, tpu.core_type = #tpu.core_type<tc>} {
    %c0 = arith.constant 0 : index
    %c0_0 = arith.constant 0 : index
    %0 = vector.load %arg0[%c0, %c0_0] : memref<16x32xf32, #tpu.memory_space<vmem>>, vector<16x32xf32>
    %c0_1 = arith.constant 0 : index
    %c0_2 = arith.constant 0 : index
    %1 = vector.load %arg5[%c0_1, %c0_2] : memref<1x32xf32, #tpu.memory_space<vmem>>, vector<1x32xf32>
    %2 = arith.mulf %0, %0 : vector<16x32xf32>
    %cst = arith.constant dense<0.000000e+00> : vector<16xf32>
    %3 = vector.multi_reduction <add>, %2, %cst [1] : vector<16x32xf32> to vector<16xf32>
    %4 = vector.shape_cast %3 : vector<16xf32> to vector<16x1xf32>
    %cst_3 = arith.constant 3.200000e+01 : f32
    %5 = vector.broadcast %cst_3 : f32 to vector<16x1xf32>
    %6 = arith.divf %4, %5 : vector<16x1xf32>
    %cst_4 = arith.constant 9.99999997E-7 : f32
    %7 = vector.broadcast %cst_4 : f32 to vector<16x1xf32>
    %8 = arith.addf %6, %7 : vector<16x1xf32>
    %9 = math.rsqrt %8 : vector<16x1xf32>
    %10 = vector.broadcast %9 : vector<16x1xf32> to vector<16x32xf32>
    %11 = arith.mulf %0, %10 : vector<16x32xf32>
    %12 = vector.broadcast %1 : vector<1x32xf32> to vector<16x32xf32>
    %13 = arith.mulf %11, %12 : vector<16x32xf32>
    %14 = arith.truncf %13 : vector<16x32xf32> to vector<16x32xbf16>
    %c0_5 = arith.constant 0 : index
    %c0_6 = arith.constant 0 : index
    %15 = vector.load %arg1[%c0_5, %c0_6] : memref<32x128xbf16, #tpu.memory_space<vmem>>, vector<32x128xbf16>
    %cst_7 = arith.constant dense<0.000000e+00> : vector<16x128xf32>
    %16 = tpu.matmul %14, %15, %cst_7 {dimension_numbers = #tpu.dot_dimension_numbers<[1], [0], [0], [1], [0, 0, 1, 1], [], []>} : vector<16x32xbf16>, vector<32x128xbf16>, vector<16x128xf32> -> vector<16x128xf32>
    %c0_8 = arith.constant 0 : index
    %c0_9 = arith.constant 0 : index
    %17 = vector.load %arg2[%c0_8, %c0_9] : memref<1x128xf32, #tpu.memory_space<vmem>>, vector<1x128xf32>
    %18 = vector.broadcast %17 : vector<1x128xf32> to vector<16x128xf32>
    %19 = arith.addf %16, %18 : vector<16x128xf32>
    %20 = vector.extract_strided_slice %19 {offsets = [0, 0], sizes = [16, 32], strides = [1, 1]} : vector<16x128xf32> to vector<16x32xf32>
    %21 = vector.extract_strided_slice %19 {offsets = [0, 32], sizes = [16, 32], strides = [1, 1]} : vector<16x128xf32> to vector<16x32xf32>
    %22 = vector.extract_strided_slice %19 {offsets = [0, 64], sizes = [16, 32], strides = [1, 1]} : vector<16x128xf32> to vector<16x32xf32>
    %c0_10 = arith.constant 0 : index
    %c0_11 = arith.constant 0 : index
    %23 = vector.load %arg9[%c0_10, %c0_11] : memref<32x32xf32, #tpu.memory_space<vmem>>, vector<32x32xf32>
    %24 = tpu.transpose %21, [1, 0] : vector<16x32xf32> -> vector<32x16xf32>
    %25 = vector.extract_strided_slice %20 {offsets = [0, 0], sizes = [8, 32], strides = [1, 1]} : vector<16x32xf32> to vector<8x32xf32>
    %26 = arith.truncf %25 : vector<8x32xf32> to vector<8x32xbf16>
    %27 = vector.extract_strided_slice %24 {offsets = [0, 0], sizes = [32, 8], strides = [1, 1]} : vector<32x16xf32> to vector<32x8xf32>
    %28 = tpu.concatenate %27, %27, %27, %27 in 1 : vector<32x8xf32>, vector<32x8xf32>, vector<32x8xf32>, vector<32x8xf32> -> vector<32x32xf32>
    %29 = arith.mulf %28, %23 : vector<32x32xf32>
    %30 = arith.truncf %29 : vector<32x32xf32> to vector<32x32xbf16>
    %31 = vector.extract_strided_slice %22 {offsets = [0, 0], sizes = [8, 32], strides = [1, 1]} : vector<16x32xf32> to vector<8x32xf32>
    %32 = tpu.concatenate %31, %31, %31, %31 in 0 : vector<8x32xf32>, vector<8x32xf32>, vector<8x32xf32>, vector<8x32xf32> -> vector<32x32xf32>
    %33 = arith.mulf %32, %23 : vector<32x32xf32>
    %34 = arith.truncf %33 : vector<32x32xf32> to vector<32x32xbf16>
    %cst_12 = arith.constant dense<0.000000e+00> : vector<8x32xf32>
    %35 = tpu.matmul %26, %30, %cst_12 {dimension_numbers = #tpu.dot_dimension_numbers<[1], [0], [0], [1], [0, 0, 1, 1], [], []>} : vector<8x32xbf16>, vector<32x32xbf16>, vector<8x32xf32> -> vector<8x32xf32>
    %cst_13 = arith.constant dense<0xFF800000> : vector<8xf32>
    %36 = vector.multi_reduction <maximumf>, %35, %cst_13 [1] : vector<8x32xf32> to vector<8xf32>
    %37 = vector.shape_cast %36 : vector<8xf32> to vector<8x1xf32>
    %38 = vector.broadcast %37 : vector<8x1xf32> to vector<8x32xf32>
    %39 = arith.subf %35, %38 : vector<8x32xf32>
    %40 = math.exp %39 : vector<8x32xf32>
    %cst_14 = arith.constant dense<0.000000e+00> : vector<8x32xf32>
    %41 = tpu.matmul %40, %23, %cst_14 {dimension_numbers = #tpu.dot_dimension_numbers<[1], [0], [0], [1], [0, 0, 1, 1], [], []>} : vector<8x32xf32>, vector<32x32xf32>, vector<8x32xf32> -> vector<8x32xf32>
    %42 = tpu.reciprocal %41 {approx = true} : vector<8x32xf32> -> vector<8x32xf32>
    %43 = arith.mulf %40, %42 : vector<8x32xf32>
    %44 = arith.truncf %43 : vector<8x32xf32> to vector<8x32xbf16>
    %cst_15 = arith.constant dense<0.000000e+00> : vector<8x32xf32>
    %45 = tpu.matmul %44, %34, %cst_15 {dimension_numbers = #tpu.dot_dimension_numbers<[1], [0], [0], [1], [0, 0, 1, 1], [], []>} : vector<8x32xbf16>, vector<32x32xbf16>, vector<8x32xf32> -> vector<8x32xf32>
    %46 = vector.extract_strided_slice %20 {offsets = [8, 0], sizes = [8, 32], strides = [1, 1]} : vector<16x32xf32> to vector<8x32xf32>
    %47 = arith.truncf %46 : vector<8x32xf32> to vector<8x32xbf16>
    %48 = vector.extract_strided_slice %24 {offsets = [0, 8], sizes = [32, 8], strides = [1, 1]} : vector<32x16xf32> to vector<32x8xf32>
    %49 = tpu.concatenate %48, %48, %48, %48 in 1 : vector<32x8xf32>, vector<32x8xf32>, vector<32x8xf32>, vector<32x8xf32> -> vector<32x32xf32>
    %50 = arith.mulf %49, %23 : vector<32x32xf32>
    %51 = arith.truncf %50 : vector<32x32xf32> to vector<32x32xbf16>
    %52 = vector.extract_strided_slice %22 {offsets = [8, 0], sizes = [8, 32], strides = [1, 1]} : vector<16x32xf32> to vector<8x32xf32>
    %53 = tpu.concatenate %52, %52, %52, %52 in 0 : vector<8x32xf32>, vector<8x32xf32>, vector<8x32xf32>, vector<8x32xf32> -> vector<32x32xf32>
    %54 = arith.mulf %53, %23 : vector<32x32xf32>
    %55 = arith.truncf %54 : vector<32x32xf32> to vector<32x32xbf16>
    %cst_16 = arith.constant dense<0.000000e+00> : vector<8x32xf32>
    %56 = tpu.matmul %47, %51, %cst_16 {dimension_numbers = #tpu.dot_dimension_numbers<[1], [0], [0], [1], [0, 0, 1, 1], [], []>} : vector<8x32xbf16>, vector<32x32xbf16>, vector<8x32xf32> -> vector<8x32xf32>
    %cst_17 = arith.constant dense<0xFF800000> : vector<8xf32>
    %57 = vector.multi_reduction <maximumf>, %56, %cst_17 [1] : vector<8x32xf32> to vector<8xf32>
    %58 = vector.shape_cast %57 : vector<8xf32> to vector<8x1xf32>
    %59 = vector.broadcast %58 : vector<8x1xf32> to vector<8x32xf32>
    %60 = arith.subf %56, %59 : vector<8x32xf32>
    %61 = math.exp %60 : vector<8x32xf32>
    %cst_18 = arith.constant dense<0.000000e+00> : vector<8x32xf32>
    %62 = tpu.matmul %61, %23, %cst_18 {dimension_numbers = #tpu.dot_dimension_numbers<[1], [0], [0], [1], [0, 0, 1, 1], [], []>} : vector<8x32xf32>, vector<32x32xf32>, vector<8x32xf32> -> vector<8x32xf32>
    %63 = tpu.reciprocal %62 {approx = true} : vector<8x32xf32> -> vector<8x32xf32>
    %64 = arith.mulf %61, %63 : vector<8x32xf32>
    %65 = arith.truncf %64 : vector<8x32xf32> to vector<8x32xbf16>
    %cst_19 = arith.constant dense<0.000000e+00> : vector<8x32xf32>
    %66 = tpu.matmul %65, %55, %cst_19 {dimension_numbers = #tpu.dot_dimension_numbers<[1], [0], [0], [1], [0, 0, 1, 1], [], []>} : vector<8x32xbf16>, vector<32x32xbf16>, vector<8x32xf32> -> vector<8x32xf32>
    %67 = tpu.concatenate %45, %66 in 0 : vector<8x32xf32>, vector<8x32xf32> -> vector<16x32xf32>
    %68 = arith.truncf %67 : vector<16x32xf32> to vector<16x32xbf16>
    %c0_20 = arith.constant 0 : index
    %c0_21 = arith.constant 0 : index
    %69 = vector.load %arg3[%c0_20, %c0_21] : memref<32x32xbf16, #tpu.memory_space<vmem>>, vector<32x32xbf16>
    %cst_22 = arith.constant dense<0.000000e+00> : vector<16x32xf32>
    %70 = tpu.matmul %68, %69, %cst_22 {dimension_numbers = #tpu.dot_dimension_numbers<[1], [0], [0], [1], [0, 0, 1, 1], [], []>} : vector<16x32xbf16>, vector<32x32xbf16>, vector<16x32xf32> -> vector<16x32xf32>
    %c0_23 = arith.constant 0 : index
    %c0_24 = arith.constant 0 : index
    %71 = vector.load %arg4[%c0_23, %c0_24] : memref<1x32xf32, #tpu.memory_space<vmem>>, vector<1x32xf32>
    %72 = vector.broadcast %71 : vector<1x32xf32> to vector<16x32xf32>
    %73 = arith.addf %70, %72 : vector<16x32xf32>
    %74 = arith.addf %0, %73 : vector<16x32xf32>
    %c0_25 = arith.constant 0 : index
    %c0_26 = arith.constant 0 : index
    %75 = vector.load %arg6[%c0_25, %c0_26] : memref<1x32xf32, #tpu.memory_space<vmem>>, vector<1x32xf32>
    %76 = arith.mulf %74, %74 : vector<16x32xf32>
    %cst_27 = arith.constant dense<0.000000e+00> : vector<16xf32>
    %77 = vector.multi_reduction <add>, %76, %cst_27 [1] : vector<16x32xf32> to vector<16xf32>
    %78 = vector.shape_cast %77 : vector<16xf32> to vector<16x1xf32>
    %cst_28 = arith.constant 3.200000e+01 : f32
    %79 = vector.broadcast %cst_28 : f32 to vector<16x1xf32>
    %80 = arith.divf %78, %79 : vector<16x1xf32>
    %cst_29 = arith.constant 9.99999997E-7 : f32
    %81 = vector.broadcast %cst_29 : f32 to vector<16x1xf32>
    %82 = arith.addf %80, %81 : vector<16x1xf32>
    %83 = math.rsqrt %82 : vector<16x1xf32>
    %84 = vector.broadcast %83 : vector<16x1xf32> to vector<16x32xf32>
    %85 = arith.mulf %74, %84 : vector<16x32xf32>
    %86 = vector.broadcast %75 : vector<1x32xf32> to vector<16x32xf32>
    %87 = arith.mulf %85, %86 : vector<16x32xf32>
    %88 = arith.truncf %87 : vector<16x32xf32> to vector<16x32xbf16>
    %c0_30 = arith.constant 0 : index
    %c0_31 = arith.constant 0 : index
    %89 = vector.load %arg7[%c0_30, %c0_31] : memref<32x128xbf16, #tpu.memory_space<vmem>>, vector<32x128xbf16>
    %cst_32 = arith.constant dense<0.000000e+00> : vector<16x128xf32>
    %90 = tpu.matmul %88, %89, %cst_32 {dimension_numbers = #tpu.dot_dimension_numbers<[1], [0], [0], [1], [0, 0, 1, 1], [], []>} : vector<16x32xbf16>, vector<32x128xbf16>, vector<16x128xf32> -> vector<16x128xf32>
    %91 = vector.extract_strided_slice %90 {offsets = [0, 0], sizes = [16, 64], strides = [1, 1]} : vector<16x128xf32> to vector<16x64xf32>
    %92 = arith.negf %91 : vector<16x64xf32>
    %93 = math.exp %92 : vector<16x64xf32>
    %cst_33 = arith.constant 1.000000e+00 : f32
    %94 = vector.broadcast %cst_33 : f32 to vector<16x64xf32>
    %95 = arith.addf %94, %93 : vector<16x64xf32>
    %96 = arith.divf %94, %95 : vector<16x64xf32>
    %97 = arith.mulf %91, %96 : vector<16x64xf32>
    %98 = vector.extract_strided_slice %90 {offsets = [0, 64], sizes = [16, 64], strides = [1, 1]} : vector<16x128xf32> to vector<16x64xf32>
    %99 = arith.mulf %97, %98 : vector<16x64xf32>
    %100 = arith.truncf %99 : vector<16x64xf32> to vector<16x64xbf16>
    %c0_34 = arith.constant 0 : index
    %c0_35 = arith.constant 0 : index
    %101 = vector.load %arg8[%c0_34, %c0_35] : memref<64x32xbf16, #tpu.memory_space<vmem>>, vector<64x32xbf16>
    %cst_36 = arith.constant dense<0.000000e+00> : vector<16x32xf32>
    %102 = tpu.matmul %100, %101, %cst_36 {dimension_numbers = #tpu.dot_dimension_numbers<[1], [0], [0], [1], [0, 0, 1, 1], [], []>} : vector<16x64xbf16>, vector<64x32xbf16>, vector<16x32xf32> -> vector<16x32xf32>
    %103 = arith.addf %74, %102 : vector<16x32xf32>
    %c0_37 = arith.constant 0 : index
    %c0_38 = arith.constant 0 : index
    %104 = vector.load %arg10[%c0_37, %c0_38] : memref<16x32xf32, #tpu.memory_space<vmem>>, vector<16x32xf32>
    tpu.vector_store %arg10[%c0_37, %c0_38], %103 {strides = array<i32>} : memref<16x32xf32, #tpu.memory_space<vmem>>, vector<16x32xf32>,
    return
  }
}

</mosaic_0001>

<llo_original>
// kernel: block_forward.1
$region0: #{block_forward.1}
  #allocation0 [shape = 'u32[]', space=smem, size = 0x4, offset = 0x4, fixed_abs, tag = 'smem constant byte address 0x4 - core index']
  #allocation1 [shape = 'u32[144,128]{1,0:T(1,128)}', space=vmem, size = 0x12000, scoped, tag = 'internal scratch']
  %s0 = inlined_call_operand.vmem [shape: f32[16,32], index: 0, kind: input, shape index: {}]
  %s1 = inlined_call_operand.vmem [shape: bf16[32,128], index: 1, kind: input, shape index: {}]
  %s2 = inlined_call_operand.vmem [shape: f32[1,128], index: 2, kind: input, shape index: {}]
  %s3 = inlined_call_operand.hbm [shape: bf16[32,32], index: 3, kind: input, shape index: {}]
  %s4 = inlined_call_operand.vmem [shape: f32[1,32], index: 4, kind: input, shape index: {}]
  %s5 = inlined_call_operand.hbm [shape: f32[1,32], index: 5, kind: input, shape index: {}]
  %s6 = inlined_call_operand.hbm [shape: f32[1,32], index: 6, kind: input, shape index: {}]
  %s7 = inlined_call_operand.hbm [shape: bf16[32,128], index: 7, kind: input, shape index: {}]
  %s8 = inlined_call_operand.vmem [shape: bf16[64,32], index: 8, kind: input, shape index: {}]
  %s9 = inlined_call_operand.vmem [shape: f32[32,32], index: 9, kind: input, shape index: {}]
  %s10 = inlined_call_operand.hbm [shape: f32[16,32], index: 10, kind: output, shape index: {}]
  %s11 = sld [smem:[#allocation0]]
  $region66: #{block_forward.1} parent=0
    _
  %s13 = ssub.s32 1, %s11
  %s14 = scalar_select 0, %s13, %s11
  $region1: #{block_forward.1} parent=0
    #allocation2 [shape = 'u8[8192]{0}', space=vmem, size = 0x2000, scoped, tag = 'input window, operand 3, single buffered']
    #allocation3 [shape = 's32[1]{0}', space=sflag, size = 0x4, scoped, tag = 'scoped memory for block_forward.1']
    #allocation4 [shape = 's32[1]{0}', space=sflag, size = 0x4, scoped, tag = 'scoped memory for block_forward.1']
    #allocation5 [shape = 'u8[512]{0}', space=vmem, size = 0x400, scoped, tag = 'input window, operand 5, single buffered']
    #allocation6 [shape = 's32[1]{0}', space=sflag, size = 0x4, scoped, tag = 'scoped memory for block_forward.1']
    #allocation7 [shape = 'u8[512]{0}', space=vmem, size = 0x400, scoped, tag = 'input window, operand 6, single buffered']
    #allocation8 [shape = 'u8[8192]{0}', space=vmem, size = 0x2000, scoped, tag = 'input window, operand 7, single buffered']
    #allocation9 [shape = 's32[1]{0}', space=sflag, size = 0x4, scoped, tag = 'scoped memory for block_forward.1']
    #allocation10 [shape = 'u8[8192]{0}', space=vmem, size = 0x2000, scoped, tag = 'output window, operand 0, single buffered']
    %15 = vsyncpa [#allocation3], 0
    %16 = vsyncpa [#allocation6], 0
    %17 = vsyncpa [#allocation9], 0
    %18 = vsyncpa [#allocation4], 0
    // Predicated region
    $region2: #{block_forward.1} parent=1 // pred_check
      _
    $region3: #{block_forward.1} parent=1 // pred_check_branch
      %20 = sbr.rel (0) target = $region5
    $region4: #{block_forward.1} parent=1 // pred_region
      _
    $region5: #{block_forward.1} parent=1 // pred_fallthru
      _
    // Predicated region
    $region6: #{block_forward.1} parent=1 // pred_check
      _
    $region7: #{block_forward.1} parent=1 // pred_check_branch
      %22 = sbr.rel (0) target = $region9
    $region8: #{block_forward.1} parent=1 // pred_region
      _
    $region9: #{block_forward.1} parent=1 // pred_fallthru
      _
    // Predicated region
    $region10: #{block_forward.1} parent=1 // pred_check
      _
    $region11: #{block_forward.1} parent=1 // pred_check_branch
      %24 = sbr.rel (0) target = $region13
    $region12: #{block_forward.1} parent=1 // pred_region
      _
    $region13: #{block_forward.1} parent=1 // pred_fallthru
      _
    // Predicated region
    $region14: #{block_forward.1} parent=1 // pred_check
      _
    $region15: #{block_forward.1} parent=1 // pred_check_branch
      %26 = sbr.rel (0) target = $region17
    $region16: #{block_forward.1} parent=1 // pred_region
      %s28 = ssub.s32 256, 256
      %29 = vsyncadd [#allocation3], %s28
      %s30 = sshll.u32 [#allocation2], 4
      %s31 = int_to_ptr.vmem [resolvable:$true] %s30
      %36 = dma.hbm_to_vmem [thread:$0]  %s3, 256, %s31, [#allocation3], 64, 64, 4
    $region17: #{block_forward.1} parent=1 // pred_fallthru
      _
    // Predicated region
    $region18: #{block_forward.1} parent=1 // pred_check
      _
    $region19: #{block_forward.1} parent=1 // pred_check_branch
      %38 = sbr.rel (0) target = $region21
    $region20: #{block_forward.1} parent=1 // pred_region
      _
    $region21: #{block_forward.1} parent=1 // pred_fallthru
      _
    // Predicated region
    $region22: #{block_forward.1} parent=1 // pred_check
      _
    $region23: #{block_forward.1} parent=1 // pred_check_branch
      %40 = sbr.rel (0) target = $region25
    $region24: #{block_forward.1} parent=1 // pred_region
      %s42 = ssub.s32 16, 16
      %43 = vsyncadd [#allocation6], %s42
      %s45 = sshll.u32 [#allocation5], 4
      %s46 = int_to_ptr.vmem [resolvable:$true] %s45
      %48 = dma.hbm_to_vmem [thread:$0]  %s5, 16, %s46, [#allocation6]
    $region25: #{block_forward.1} parent=1 // pred_fallthru
      _
    // Predicated region
    $region26: #{block_forward.1} parent=1 // pred_check
      _
    $region27: #{block_forward.1} parent=1 // pred_check_branch
      %50 = sbr.rel (0) target = $region29
    $region28: #{block_forward.1} parent=1 // pred_region
      %s52 = ssub.s32 16, 16
      %53 = vsyncadd [#allocation6], %s52
      %s55 = sshll.u32 [#allocation7], 4
      %s56 = int_to_ptr.vmem [resolvable:$true] %s55
      %58 = dma.hbm_to_vmem [thread:$0]  %s6, 16, %s56, [#allocation6]
    $region29: #{block_forward.1} parent=1 // pred_fallthru
      _
    // Predicated region
    $region30: #{block_forward.1} parent=1 // pred_check
      _
    $region31: #{block_forward.1} parent=1 // pred_check_branch
      %60 = sbr.rel (0) target = $region33
    $region32: #{block_forward.1} parent=1 // pred_region
      %s62 = ssub.s32 256, 256
      %63 = vsyncadd [#allocation9], %s62
      %s64 = sshll.u32 [#allocation8], 4
      %s65 = int_to_ptr.vmem [resolvable:$true] %s64
      %70 = dma.hbm_to_vmem [thread:$0]  %s7, 256, %s65, [#allocation9], 64, 64, 4
    $region33: #{block_forward.1} parent=1 // pred_fallthru
      _
    // Predicated region
    $region34: #{block_forward.1} parent=1 // pred_check
      _
    $region35: #{block_forward.1} parent=1 // pred_check_branch
      %72 = sbr.rel (0) target = $region37
    $region36: #{block_forward.1} parent=1 // pred_region
      _
    $region37: #{block_forward.1} parent=1 // pred_fallthru
      _
    // Predicated region
    $region38: #{block_forward.1} parent=1 // pred_check
      _
    $region39: #{block_forward.1} parent=1 // pred_check_branch
      %74 = sbr.rel (0) target = $region41
    $region40: #{block_forward.1} parent=1 // pred_region
      _
    $region41: #{block_forward.1} parent=1 // pred_fallthru
      _
    // Predicated region
    $region42: #{block_forward.1} parent=1 // pred_check
      _
    $region43: #{block_forward.1} parent=1 // pred_check_branch
      %76 = sbr.rel (0) target = $region45
    $region44: #{block_forward.1} parent=1 // pred_region
      %77 = dma.done [#allocation3], 256
    $region45: #{block_forward.1} parent=1 // pred_fallthru
      _
    // Predicated region
    $region46: #{block_forward.1} parent=1 // pred_check
      _
    $region47: #{block_forward.1} parent=1 // pred_check_branch
      %79 = sbr.rel (0) target = $region49
    $region48: #{block_forward.1} parent=1 // pred_region
      %80 = dma.done [#allocation6], 16
    $region49: #{block_forward.1} parent=1 // pred_fallthru
      _
    // Predicated region
    $region50: #{block_forward.1} parent=1 // pred_check
      _
    $region51: #{block_forward.1} parent=1 // pred_check_branch
      %82 = sbr.rel (0) target = $region53
    $region52: #{block_forward.1} parent=1 // pred_region
      %83 = dma.done [#allocation6], 16
    $region53: #{block_forward.1} parent=1 // pred_fallthru
      _
    // Predicated region
    $region54: #{block_forward.1} parent=1 // pred_check
      _
    $region55: #{block_forward.1} parent=1 // pred_check_branch
      %85 = sbr.rel (0) target = $region57
    $region56: #{block_forward.1} parent=1 // pred_region
      %86 = dma.done [#allocation9], 256
    $region57: #{block_forward.1} parent=1 // pred_fallthru
      _
    %v88 = vld [vmem:[%s0] sm:$0xff]
    %v89 = vld [vmem:[%s0 + $0x8] sm:$0xff]
    %v90 = vld [vmem:[#allocation5] sm:$0x1]
    %v91 = vmul.f32 %v88, %v88
    %v92 = vmul.f32 %v89, %v89
    %vm93 = vcmask 261120
    %v94 = vsel %vm93, %v91, 0.0
    %95 = vadd.xlane.f32.xlu0 %v94
    %v96 = vpop.xlane.xlu0 %95
    %v97 = vsel %vm93, %v92, 0.0
    %98 = vadd.xlane.f32.xlu0 %v97
    %v99 = vpop.xlane.xlu0 %98
    %v100 = vrcp.pop 32.0
    %v101 = vmul.f32 %v96, %v100
    %v102 = vmul.f32 %v99, %v100
    %v103 = vadd.f32 %v101, 1e-06
    %v104 = vadd.f32 %v102, 1e-06
    %v105 = vrsqrt.pop %v103
    %v106 = vrsqrt.pop %v104
    %v107 = vmul.f32 %v88, %v105
    %v108 = vmul.f32 %v89, %v106
    %v110 = vlaneseq
    %v111 = vshrl.u32 %v110, 7
    %v112 = vsub.s32 0, %v111
    %v113 = vrot.slane %v90, %v112
    %v115 = vmul.f32 %v107, %v113
    %v116 = vmul.f32 %v108, %v113
    %v117 = vpack.c.bf16 %v116, %v115
    %v118 = vld [vmem:[%s1] sm:$0xf]
    %v119 = vld [vmem:[%s1 + $0x4] sm:$0xf]
    %v120 = vld [vmem:[%s1 + $0x8] sm:$0xf]
    %v121 = vld [vmem:[%s1 + $0xc] sm:$0xf]
    %v122 = vld [vmem:[%s2] sm:$0x1]
    %v124 = vlaneseq
    %v125 = vshrl.u32 %v124, 7
    %v126 = vsub.s32 0, %v125
    %v127 = vrot.slane %v122, %v126
    %v133 = vunpack.c.l.b16 %v118
    %v134 = vunpack.c.l.b16 %v119
    %v135 = vunpack.c.l.b16 %v120
    %v136 = vunpack.c.l.b16 %v121
    %v137 = vpack.c.b16 %v134, %v133
    %v138 = vpack.c.b16 %v136, %v135
    %v142 = vsel %vm93, %v117, 0
    %144 = vmatprep.subr.bf16.mxu0 0
    %145 = vmatpush1.bf16.msra.mxu0 %v137
    %146 = vmatprep.subr.bf16.mxu0 0
    %147 = vmatpush1.bf16.msra.mxu0 %v138
    %148 = vmatprep.subr.bf16.mxu0 0
    %149 = vmatpush1.bf16.msra.mxu0 0
    %150 = vmatprep.subr.bf16.mxu0 0
    %151 = vmatpush1.bf16.msra.mxu0 0
    %152 = vmatprep.subr.bf16.mxu0 0
    %153 = vmatpush1.bf16.msra.mxu0 0
    %154 = vmatprep.subr.bf16.mxu0 0
    %155 = vmatpush1.bf16.msra.mxu0 0
    %156 = vmatprep.subr.bf16.mxu0 0
    %157 = vmatpush1.bf16.msra.mxu0 0
    %158 = vmatprep.subr.bf16.mxu0 0
    %159 = vmatpush1.bf16.msra.mxu0 0
    %160 = vmatprep.subr.bf16.mxu0 0
    %161 = vmatpush1.bf16.msra.mxu0 0
    %162 = vmatprep.subr.bf16.mxu0 0
    %163 = vmatpush1.bf16.msra.mxu0 0
    %164 = vmatprep.subr.bf16.mxu0 0
    %165 = vmatpush1.bf16.msra.mxu0 0
    %166 = vmatprep.subr.bf16.mxu0 0
    %167 = vmatpush1.bf16.msra.mxu0 0
    %168 = vmatprep.subr.bf16.mxu0 0
    %169 = vmatpush1.bf16.msra.mxu0 0
    %170 = vmatprep.subr.bf16.mxu0 0
    %171 = vmatpush1.bf16.msra.mxu0 0
    %172 = vmatprep.subr.bf16.mxu0 0
    %173 = vmatpush1.bf16.msra.mxu0 0
    %174 = vmatprep.subr.bf16.mxu0 0
    %175 = vmatpush1.bf16.msra.mxu0 0
    %176 = vmatprep.mubr.bf16.mxu0 0
    %177 = vmatmul.mubr.bf16.gmra.mrb[0].mxu0 %v142
    %v178 = vpop.f32.mrb[0].mxu0
    %v179 = vadd.f32 %v127, %v178
    %v180 = vpop.f32.mrb[0].mxu0
    %v181 = vpop.f32.mrb[0].mxu0
    %v182 = vadd.f32 %v127, %v181
    %v183 = vpop.f32.mrb[0].mxu0
    %184 = vdwg.mxu0
    %v185 = vld [vmem:[%s9] sm:$0xff]
    %v186 = vld [vmem:[%s9 + $0x8] sm:$0xff]
    %v187 = vld [vmem:[%s9 + $0x10] sm:$0xff]
    %v188 = vld [vmem:[%s9 + $0x18] sm:$0xff]
    %191 = vrot.lane.b32.xlu0 %v179, 96
    %v192 = vpop.permute.xlu0 %191
    %193 = vrot.lane.b32.xlu0 %v182, 96
    %v194 = vpop.permute.xlu0 %193
    %197 = vxpose.xlu0.b32.start [1/16] %v192, 128
    %198 = vxpose.xlu0.b32.cont [2/16] %v194, 128
    %199 = vxpose.xlu0.b32.cont [3/16] 0.0, 128
    %200 = vxpose.xlu0.b32.cont [4/16] 0.0, 128
    %201 = vxpose.xlu0.b32.cont [5/16] 0.0, 128
    %202 = vxpose.xlu0.b32.cont [6/16] 0.0, 128
    %203 = vxpose.xlu0.b32.cont [7/16] 0.0, 128
    %204 = vxpose.xlu0.b32.cont [8/16] 0.0, 128
    %205 = vxpose.xlu0.b32.cont [9/16] 0.0, 128
    %206 = vxpose.xlu0.b32.cont [10/16] 0.0, 128
    %207 = vxpose.xlu0.b32.cont [11/16] 0.0, 128
    %208 = vxpose.xlu0.b32.cont [12/16] 0.0, 128
    %209 = vxpose.xlu0.b32.cont [13/16] 0.0, 128
    %210 = vxpose.xlu0.b32.cont [14/16] 0.0, 128
    %211 = vxpose.xlu0.b32.cont [15/16] 0.0, 128
    %212 = vxpose.xlu0.b32.end [16/16] 0.0, 128
    %v213 = vpop.trf.xlu0
    %v214 = vpop.trf.xlu0
    %v215 = vpop.trf.xlu0
    %v216 = vpop.trf.xlu0
    %v217 = vpop.trf.xlu0
    %v218 = vpop.trf.xlu0
    %v219 = vpop.trf.xlu0
    %v220 = vpop.trf.xlu0
    %v221 = vpop.trf.xlu0
    %v222 = vpop.trf.xlu0
    %v223 = vpop.trf.xlu0
    %v224 = vpop.trf.xlu0
    %v225 = vpop.trf.xlu0
    %v226 = vpop.trf.xlu0
    %v227 = vpop.trf.xlu0
    %v228 = vpop.trf.xlu0
    %v229 = vpack.c.bf16 %v179, %v179
    %234 = vrot.lane.b32.xlu0 %v213, 8
    %v235 = vpop.permute.xlu0 %234
    %236 = vrot.lane.b32.xlu0 %v214, 8
    %v237 = vpop.permute.xlu0 %236
    %238 = vrot.lane.b32.xlu0 %v215, 8
    %v239 = vpop.permute.xlu0 %238
    %240 = vrot.lane.b32.xlu0 %v216, 8
    %v241 = vpop.permute.xlu0 %240
    %246 = vrot.lane.b32.xlu0 %v213, 16
    %v247 = vpop.permute.xlu0 %246
    %248 = vrot.lane.b32.xlu0 %v214, 16
    %v249 = vpop.permute.xlu0 %248
    %250 = vrot.lane.b32.xlu0 %v215, 16
    %v251 = vpop.permute.xlu0 %250
    %252 = vrot.lane.b32.xlu0 %v216, 16
    %v253 = vpop.permute.xlu0 %252
    %258 = vrot.lane.b32.xlu0 %v213, 24
    %v259 = vpop.permute.xlu0 %258
    %260 = vrot.lane.b32.xlu0 %v214, 24
    %v261 = vpop.permute.xlu0 %260
    %262 = vrot.lane.b32.xlu0 %v215, 24
    %v263 = vpop.permute.xlu0 %262
    %264 = vrot.lane.b32.xlu0 %v216, 24
    %v265 = vpop.permute.xlu0 %264
    %vm270 = vcmask 64512
    %v271 = vsel %vm270, %v213, %v235
    %v272 = vsel %vm270, %v214, %v237
    %v273 = vsel %vm270, %v215, %v239
    %v274 = vsel %vm270, %v216, %v241
    %vm275 = vcmask 130048
    %v276 = vsel %vm275, %v271, %v247
    %v277 = vsel %vm275, %v272, %v249
    %v278 = vsel %vm275, %v273, %v251
    %v279 = vsel %vm275, %v274, %v253
    %vm280 = vcmask 195584
    %v281 = vsel %vm280, %v276, %v259
    %v282 = vsel %vm280, %v277, %v261
    %v283 = vsel %vm280, %v278, %v263
    %v284 = vsel %vm280, %v279, %v265
    %v285 = vmul.f32 %v281, %v185
    %v286 = vmul.f32 %v282, %v186
    %v287 = vmul.f32 %v283, %v187
    %v288 = vmul.f32 %v284, %v188
    %v289 = vpack.c.bf16 %v286, %v285
    %v290 = vpack.c.bf16 %v288, %v287
    %295 = vrot.lane.b32.xlu0 %v185, 64
    %v296 = vpop.permute.xlu0 %295
    %297 = vrot.lane.b32.xlu0 %v186, 64
    %v298 = vpop.permute.xlu0 %297
    %299 = vrot.lane.b32.xlu0 %v187, 64
    %v300 = vpop.permute.xlu0 %299
    %301 = vrot.lane.b32.xlu0 %v188, 64
    %v302 = vpop.permute.xlu0 %301
    %v307 = vmul.f32 %v179, %v296
    %v308 = vmul.f32 %v179, %v298
    %v309 = vmul.f32 %v179, %v300
    %v310 = vmul.f32 %v179, %v302
    %v311 = vpack.c.bf16 %v308, %v307
    %v312 = vpack.c.bf16 %v310, %v309
    %v314 = vsel %vm93, %v229, 0
    %316 = vmatprep.subr.bf16.mxu0 0
    %317 = vmatpush1.bf16.msra.mxu0 %v289
    %318 = vmatprep.subr.bf16.mxu0 0
    %319 = vmatpush1.bf16.msra.mxu0 %v290
    %320 = vmatprep.subr.bf16.mxu0 0
    %321 = vmatpush1.bf16.msra.mxu0 0
    %322 = vmatprep.subr.bf16.mxu0 0
    %323 = vmatpush1.bf16.msra.mxu0 0
    %324 = vmatprep.subr.bf16.mxu0 0
    %325 = vmatpush1.bf16.msra.mxu0 0
    %326 = vmatprep.subr.bf16.mxu0 0
    %327 = vmatpush1.bf16.msra.mxu0 0
    %328 = vmatprep.subr.bf16.mxu0 0
    %329 = vmatpush1.bf16.msra.mxu0 0
    %330 = vmatprep.subr.bf16.mxu0 0
    %331 = vmatpush1.bf16.msra.mxu0 0
    %332 = vmatprep.subr.bf16.mxu0 0
    %333 = vmatpush1.bf16.msra.mxu0 0
    %334 = vmatprep.subr.bf16.mxu0 0
    %335 = vmatpush1.bf16.msra.mxu0 0
    %336 = vmatprep.subr.bf16.mxu0 0
    %337 = vmatpush1.bf16.msra.mxu0 0
    %338 = vmatprep.subr.bf16.mxu0 0
    %339 = vmatpush1.bf16.msra.mxu0 0
    %340 = vmatprep.subr.bf16.mxu0 0
    %341 = vmatpush1.bf16.msra.mxu0 0
    %342 = vmatprep.subr.bf16.mxu0 0
    %343 = vmatpush1.bf16.msra.mxu0 0
    %344 = vmatprep.subr.bf16.mxu0 0
    %345 = vmatpush1.bf16.msra.mxu0 0
    %346 = vmatprep.subr.bf16.mxu0 0
    %347 = vmatpush1.bf16.msra.mxu0 0
    %348 = vmatprep.mubr.bf16.mxu0 0
    %349 = vmatmul.mubr.bf16.gmra.mrb[0].mxu0 %v314
    %v350 = vpop.f32.mrb[0].mxu0
    %v351 = vadd.f32 0.0, %v350
    %v352 = vpop.f32.mrb[0].mxu0
    %v353 = vpop.f32.mrb[0].mxu0
    %v354 = vpop.f32.mrb[0].mxu0
    %355 = vdwg.mxu0
    %v356 = vsel %vm93, %v351, -inf
    %357 = vmax.xlane.f32.xlu0 %v356
    %v358 = vpop.xlane.xlu0 %357
    %v359 = vsub.f32 %v351, %v358
    %v360 = vmul.f32 %v359, 1.442695
    %v361 = vpow.pop %v360
    %v363 = vsel %vm93, %v361, 0
    %365 = vmatprep.subr.mxu0 0.0
    %366 = vmatpush1.msra.mxu0 %v185
    %367 = vmatprep.subr.mxu0 0.0
    %368 = vmatpush1.msra.mxu0 %v186
    %369 = vmatprep.subr.mxu0 0.0
    %370 = vmatpush1.msra.mxu0 %v187
    %371 = vmatprep.subr.mxu0 0.0
    %372 = vmatpush1.msra.mxu0 %v188
    %373 = vmatprep.subr.mxu0 0.0
    %374 = vmatpush1.msra.mxu0 0.0
    %375 = vmatprep.subr.mxu0 0.0
    %376 = vmatpush1.msra.mxu0 0.0
    %377 = vmatprep.subr.mxu0 0.0
    %378 = vmatpush1.msra.mxu0 0.0
    %379 = vmatprep.subr.mxu0 0.0
    %380 = vmatpush1.msra.mxu0 0.0
    %381 = vmatprep.subr.mxu0 0.0
    %382 = vmatpush1.msra.mxu0 0.0
    %383 = vmatprep.subr.mxu0 0.0
    %384 = vmatpush1.msra.mxu0 0.0
    %385 = vmatprep.subr.mxu0 0.0
    %386 = vmatpush1.msra.mxu0 0.0
    %387 = vmatprep.subr.mxu0 0.0
    %388 = vmatpush1.msra.mxu0 0.0
    %389 = vmatprep.subr.mxu0 0.0
    %390 = vmatpush1.msra.mxu0 0.0
    %391 = vmatprep.subr.mxu0 0.0
    %392 = vmatpush1.msra.mxu0 0.0
    %393 = vmatprep.subr.mxu0 0.0
    %394 = vmatpush1.msra.mxu0 0.0
    %395 = vmatprep.subr.mxu0 0.0
    %396 = vmatpush1.msra.mxu0 0.0
    %397 = vmatprep.subr.mxu0 0.0
    %398 = vmatpush1.msra.mxu0 0.0
    %399 = vmatprep.subr.mxu0 0.0
    %400 = vmatpush1.msra.mxu0 0.0
    %401 = vmatprep.subr.mxu0 0.0
    %402 = vmatpush1.msra.mxu0 0.0
    %403 = vmatprep.subr.mxu0 0.0
    %404 = vmatpush1.msra.mxu0 0.0
    %405 = vmatprep.subr.mxu0 0.0
    %406 = vmatpush1.msra.mxu0 0.0
    %407 = vmatprep.subr.mxu0 0.0
    %408 = vmatpush1.msra.mxu0 0.0
    %409 = vmatprep.subr.mxu0 0.0
    %410 = vmatpush1.msra.mxu0 0.0
    %411 = vmatprep.subr.mxu0 0.0
    %412 = vmatpush1.msra.mxu0 0.0
    %413 = vmatprep.subr.mxu0 0.0
    %414 = vmatpush1.msra.mxu0 0.0
    %415 = vmatprep.subr.mxu0 0.0
    %416 = vmatpush1.msra.mxu0 0.0
    %417 = vmatprep.subr.mxu0 0.0
    %418 = vmatpush1.msra.mxu0 0.0
    %419 = vmatprep.subr.mxu0 0.0
    %420 = vmatpush1.msra.mxu0 0.0
    %421 = vmatprep.subr.mxu0 0.0
    %422 = vmatpush1.msra.mxu0 0.0
    %423 = vmatprep.subr.mxu0 0.0
    %424 = vmatpush1.msra.mxu0 0.0
    %425 = vmatprep.subr.mxu0 0.0
    %426 = vmatpush1.msra.mxu0 0.0
    %427 = vmatprep.subr.mxu0 0.0
    %428 = vmatpush1.msra.mxu0 0.0
    %429 = vmatprep.mubr.f32.mxu0 0.0
    %430 = vmatmul.mubr.f32.gmra.mrb[0].mxu0 %v363
    %v431 = vpop.f32.mrb[0].mxu0
    %v432 = vadd.f32 0.0, %v431
    %v433 = vpop.f32.mrb[0].mxu0
    %434 = vdwg.mxu0
    %v435 = vrcp.pop %v432
    %v436 = vmul.f32 %v361, %v435
    %v437 = vpack.c.bf16 %v436, %v436
    %440 = vrot.lane.b32.xlu0 %v311, 64
    %v441 = vpop.permute.xlu0 %440
    %442 = vrot.lane.b32.xlu0 %v312, 64
    %v443 = vpop.permute.xlu0 %442
    %v447 = vsel %vm93, %v437, 0
    %449 = vmatprep.subr.bf16.mxu0 0
    %450 = vmatpush1.bf16.msra.mxu0 %v441
    %451 = vmatprep.subr.bf16.mxu0 0
    %452 = vmatpush1.bf16.msra.mxu0 %v443
    %453 = vmatprep.subr.bf16.mxu0 0
    %454 = vmatpush1.bf16.msra.mxu0 0
    %455 = vmatprep.subr.bf16.mxu0 0
    %456 = vmatpush1.bf16.msra.mxu0 0
    %457 = vmatprep.subr.bf16.mxu0 0
    %458 = vmatpush1.bf16.msra.mxu0 0
    %459 = vmatprep.subr.bf16.mxu0 0
    %460 = vmatpush1.bf16.msra.mxu0 0
    %461 = vmatprep.subr.bf16.mxu0 0
    %462 = vmatpush1.bf16.msra.mxu0 0
    %463 = vmatprep.subr.bf16.mxu0 0
    %464 = vmatpush1.bf16.msra.mxu0 0
    %465 = vmatprep.subr.bf16.mxu0 0
    %466 = vmatpush1.bf16.msra.mxu0 0
    %467 = vmatprep.subr.bf16.mxu0 0
    %468 = vmatpush1.bf16.msra.mxu0 0
    %469 = vmatprep.subr.bf16.mxu0 0
    %470 = vmatpush1.bf16.msra.mxu0 0
    %471 = vmatprep.subr.bf16.mxu0 0
    %472 = vmatpush1.bf16.msra.mxu0 0
    %473 = vmatprep.subr.bf16.mxu0 0
    %474 = vmatpush1.bf16.msra.mxu0 0
    %475 = vmatprep.subr.bf16.mxu0 0
    %476 = vmatpush1.bf16.msra.mxu0 0
    %477 = vmatprep.subr.bf16.mxu0 0
    %478 = vmatpush1.bf16.msra.mxu0 0
    %479 = vmatprep.subr.bf16.mxu0 0
    %480 = vmatpush1.bf16.msra.mxu0 0
    %481 = vmatprep.mubr.bf16.mxu0 0
    %482 = vmatmul.mubr.bf16.gmra.mrb[0].mxu0 %v447
    %v483 = vpop.f32.mrb[0].mxu0
    %v484 = vadd.f32 0.0, %v483
    %v485 = vpop.f32.mrb[0].mxu0
    %v486 = vpop.f32.mrb[0].mxu0
    %v487 = vpop.f32.mrb[0].mxu0
    %488 = vdwg.mxu0
    %v489 = vpack.c.bf16 %v182, %v182
    %490 = vrot.lane.b32.xlu0 %v213, 120
    %v491 = vpop.permute.xlu0 %490
    %492 = vrot.lane.b32.xlu0 %v214, 120
    %v493 = vpop.permute.xlu0 %492
    %494 = vrot.lane.b32.xlu0 %v215, 120
    %v495 = vpop.permute.xlu0 %494
    %496 = vrot.lane.b32.xlu0 %v216, 120
    %v497 = vpop.permute.xlu0 %496
    %v502 = vsel %vm270, %v491, %v213
    %v503 = vsel %vm270, %v493, %v214
    %v504 = vsel %vm270, %v495, %v215
    %v505 = vsel %vm270, %v497, %v216
    %v506 = vsel %vm275, %v502, %v235
    %v507 = vsel %vm275, %v503, %v237
    %v508 = vsel %vm275, %v504, %v239
    %v509 = vsel %vm275, %v505, %v241
    %v510 = vsel %vm280, %v506, %v247
    %v511 = vsel %vm280, %v507, %v249
    %v512 = vsel %vm280, %v508, %v251
    %v513 = vsel %vm280, %v509, %v253
    %v514 = vmul.f32 %v510, %v185
    %v515 = vmul.f32 %v511, %v186
    %v516 = vmul.f32 %v512, %v187
    %v517 = vmul.f32 %v513, %v188
    %v518 = vpack.c.bf16 %v515, %v514
    %v519 = vpack.c.bf16 %v517, %v516
    %v520 = vmul.f32 %v182, %v296
    %v521 = vmul.f32 %v182, %v298
    %v522 = vmul.f32 %v182, %v300
    %v523 = vmul.f32 %v182, %v302
    %v524 = vpack.c.bf16 %v521, %v520
    %v525 = vpack.c.bf16 %v523, %v522
    %v527 = vsel %vm93, %v489, 0
    %529 = vmatprep.subr.bf16.mxu0 0
    %530 = vmatpush1.bf16.msra.mxu0 %v518
    %531 = vmatprep.subr.bf16.mxu0 0
    %532 = vmatpush1.bf16.msra.mxu0 %v519
    %533 = vmatprep.subr.bf16.mxu0 0
    %534 = vmatpush1.bf16.msra.mxu0 0
    %535 = vmatprep.subr.bf16.mxu0 0
    %536 = vmatpush1.bf16.msra.mxu0 0
    %537 = vmatprep.subr.bf16.mxu0 0
    %538 = vmatpush1.bf16.msra.mxu0 0
    %539 = vmatprep.subr.bf16.mxu0 0
    %540 = vmatpush1.bf16.msra.mxu0 0
    %541 = vmatprep.subr.bf16.mxu0 0
    %542 = vmatpush1.bf16.msra.mxu0 0
    %543 = vmatprep.subr.bf16.mxu0 0
    %544 = vmatpush1.bf16.msra.mxu0 0
    %545 = vmatprep.subr.bf16.mxu0 0
    %546 = vmatpush1.bf16.msra.mxu0 0
    %547 = vmatprep.subr.bf16.mxu0 0
    %548 = vmatpush1.bf16.msra.mxu0 0
    %549 = vmatprep.subr.bf16.mxu0 0
    %550 = vmatpush1.bf16.msra.mxu0 0
    %551 = vmatprep.subr.bf16.mxu0 0
    %552 = vmatpush1.bf16.msra.mxu0 0
    %553 = vmatprep.subr.bf16.mxu0 0
    %554 = vmatpush1.bf16.msra.mxu0 0
    %555 = vmatprep.subr.bf16.mxu0 0
    %556 = vmatpush1.bf16.msra.mxu0 0
    %557 = vmatprep.subr.bf16.mxu0 0
    %558 = vmatpush1.bf16.msra.mxu0 0
    %559 = vmatprep.subr.bf16.mxu0 0
    %560 = vmatpush1.bf16.msra.mxu0 0
    %561 = vmatprep.mubr.bf16.mxu0 0
    %562 = vmatmul.mubr.bf16.gmra.mrb[0].mxu0 %v527
    %v563 = vpop.f32.mrb[0].mxu0
    %v564 = vadd.f32 0.0, %v563
    %v565 = vpop.f32.mrb[0].mxu0
    %v566 = vpop.f32.mrb[0].mxu0
    %v567 = vpop.f32.mrb[0].mxu0
    %568 = vdwg.mxu0
    %v569 = vsel %vm93, %v564, -inf
    %570 = vmax.xlane.f32.xlu0 %v569
    %v571 = vpop.xlane.xlu0 %570
    %v572 = vsub.f32 %v564, %v571
    %v573 = vmul.f32 %v572, 1.442695
    %v574 = vpow.pop %v573
    %v576 = vsel %vm93, %v574, 0
    %578 = vmatprep.subr.mxu0 0.0
    %579 = vmatpush1.msra.mxu0 %v185
    %580 = vmatprep.subr.mxu0 0.0
    %581 = vmatpush1.msra.mxu0 %v186
    %582 = vmatprep.subr.mxu0 0.0
    %583 = vmatpush1.msra.mxu0 %v187
    %584 = vmatprep.subr.mxu0 0.0
    %585 = vmatpush1.msra.mxu0 %v188
    %586 = vmatprep.subr.mxu0 0.0
    %587 = vmatpush1.msra.mxu0 0.0
    %588 = vmatprep.subr.mxu0 0.0
    %589 = vmatpush1.msra.mxu0 0.0
    %590 = vmatprep.subr.mxu0 0.0
    %591 = vmatpush1.msra.mxu0 0.0
    %592 = vmatprep.subr.mxu0 0.0
    %593 = vmatpush1.msra.mxu0 0.0
    %594 = vmatprep.subr.mxu0 0.0
    %595 = vmatpush1.msra.mxu0 0.0
    %596 = vmatprep.subr.mxu0 0.0
    %597 = vmatpush1.msra.mxu0 0.0
    %598 = vmatprep.subr.mxu0 0.0
    %599 = vmatpush1.msra.mxu0 0.0
    %600 = vmatprep.subr.mxu0 0.0
    %601 = vmatpush1.msra.mxu0 0.0
    %602 = vmatprep.subr.mxu0 0.0
    %603 = vmatpush1.msra.mxu0 0.0
    %604 = vmatprep.subr.mxu0 0.0
    %605 = vmatpush1.msra.mxu0 0.0
    %606 = vmatprep.subr.mxu0 0.0
    %607 = vmatpush1.msra.mxu0 0.0
    %608 = vmatprep.subr.mxu0 0.0
    %609 = vmatpush1.msra.mxu0 0.0
    %610 = vmatprep.subr.mxu0 0.0
    %611 = vmatpush1.msra.mxu0 0.0
    %612 = vmatprep.subr.mxu0 0.0
    %613 = vmatpush1.msra.mxu0 0.0
    %614 = vmatprep.subr.mxu0 0.0
    %615 = vmatpush1.msra.mxu0 0.0
    %616 = vmatprep.subr.mxu0 0.0
    %617 = vmatpush1.msra.mxu0 0.0
    %618 = vmatprep.subr.mxu0 0.0
    %619 = vmatpush1.msra.mxu0 0.0
    %620 = vmatprep.subr.mxu0 0.0
    %621 = vmatpush1.msra.mxu0 0.0
    %622 = vmatprep.subr.mxu0 0.0
    %623 = vmatpush1.msra.mxu0 0.0
    %624 = vmatprep.subr.mxu0 0.0
    %625 = vmatpush1.msra.mxu0 0.0
    %626 = vmatprep.subr.mxu0 0.0
    %627 = vmatpush1.msra.mxu0 0.0
    %628 = vmatprep.subr.mxu0 0.0
    %629 = vmatpush1.msra.mxu0 0.0
    %630 = vmatprep.subr.mxu0 0.0
    %631 = vmatpush1.msra.mxu0 0.0
    %632 = vmatprep.subr.mxu0 0.0
    %633 = vmatpush1.msra.mxu0 0.0
    %634 = vmatprep.subr.mxu0 0.0
    %635 = vmatpush1.msra.mxu0 0.0
    %636 = vmatprep.subr.mxu0 0.0
    %637 = vmatpush1.msra.mxu0 0.0
    %638 = vmatprep.subr.mxu0 0.0
    %639 = vmatpush1.msra.mxu0 0.0
    %640 = vmatprep.subr.mxu0 0.0
    %641 = vmatpush1.msra.mxu0 0.0
    %642 = vmatprep.mubr.f32.mxu0 0.0
    %643 = vmatmul.mubr.f32.gmra.mrb[0].mxu0 %v576
    %v644 = vpop.f32.mrb[0].mxu0
    %v645 = vadd.f32 0.0, %v644
    %v646 = vpop.f32.mrb[0].mxu0
    %647 = vdwg.mxu0
    %v648 = vrcp.pop %v645
    %v649 = vmul.f32 %v574, %v648
    %v650 = vpack.c.bf16 %v649, %v649
    %653 = vrot.lane.b32.xlu0 %v524, 64
    %v654 = vpop.permute.xlu0 %653
    %655 = vrot.lane.b32.xlu0 %v525, 64
    %v656 = vpop.permute.xlu0 %655
    %v660 = vsel %vm93, %v650, 0
    %662 = vmatprep.subr.bf16.mxu0 0
    %663 = vmatpush1.bf16.msra.mxu0 %v654
    %664 = vmatprep.subr.bf16.mxu0 0
    %665 = vmatpush1.bf16.msra.mxu0 %v656
    %666 = vmatprep.subr.bf16.mxu0 0
    %667 = vmatpush1.bf16.msra.mxu0 0
    %668 = vmatprep.subr.bf16.mxu0 0
    %669 = vmatpush1.bf16.msra.mxu0 0
    %670 = vmatprep.subr.bf16.mxu0 0
    %671 = vmatpush1.bf16.msra.mxu0 0
    %672 = vmatprep.subr.bf16.mxu0 0
    %673 = vmatpush1.bf16.msra.mxu0 0
    %674 = vmatprep.subr.bf16.mxu0 0
    %675 = vmatpush1.bf16.msra.mxu0 0
    %676 = vmatprep.subr.bf16.mxu0 0
    %677 = vmatpush1.bf16.msra.mxu0 0
    %678 = vmatprep.subr.bf16.mxu0 0
    %679 = vmatpush1.bf16.msra.mxu0 0
    %680 = vmatprep.subr.bf16.mxu0 0
    %681 = vmatpush1.bf16.msra.mxu0 0
    %682 = vmatprep.subr.bf16.mxu0 0
    %683 = vmatpush1.bf16.msra.mxu0 0
    %684 = vmatprep.subr.bf16.mxu0 0
    %685 = vmatpush1.bf16.msra.mxu0 0
    %686 = vmatprep.subr.bf16.mxu0 0
    %687 = vmatpush1.bf16.msra.mxu0 0
    %688 = vmatprep.subr.bf16.mxu0 0
    %689 = vmatpush1.bf16.msra.mxu0 0
    %690 = vmatprep.subr.bf16.mxu0 0
    %691 = vmatpush1.bf16.msra.mxu0 0
    %692 = vmatprep.subr.bf16.mxu0 0
    %693 = vmatpush1.bf16.msra.mxu0 0
    %694 = vmatprep.mubr.bf16.mxu0 0
    %695 = vmatmul.mubr.bf16.gmra.mrb[0].mxu0 %v660
    %v696 = vpop.f32.mrb[0].mxu0
    %v697 = vadd.f32 0.0, %v696
    %v698 = vpop.f32.mrb[0].mxu0
    %v699 = vpop.f32.mrb[0].mxu0
    %v700 = vpop.f32.mrb[0].mxu0
    %701 = vdwg.mxu0
    %v702 = vpack.c.bf16 %v697, %v484
    %v703 = vld [vmem:[#allocation2] sm:$0xf]
    %v704 = vld [vmem:[#allocation2 + $0x4] sm:$0xf]
    %v705 = vld [vmem:[#allocation2 + $0x8] sm:$0xf]
    %v706 = vld [vmem:[#allocation2 + $0xc] sm:$0xf]
    %v707 = vld [vmem:[%s4] sm:$0x1]
    %v709 = vlaneseq
    %v710 = vshrl.u32 %v709, 7
    %v711 = vsub.s32 0, %v710
    %v712 = vrot.slane %v707, %v711
    %v718 = vunpack.c.l.b16 %v703
    %v719 = vunpack.c.l.b16 %v704
    %v720 = vunpack.c.l.b16 %v705
    %v721 = vunpack.c.l.b16 %v706
    %v722 = vpack.c.b16 %v719, %v718
    %v723 = vpack.c.b16 %v721, %v720
    %v727 = vsel %vm93, %v702, 0
    %729 = vmatprep.subr.bf16.mxu0 0
    %730 = vmatpush1.bf16.msra.mxu0 %v722
    %731 = vmatprep.subr.bf16.mxu0 0
    %732 = vmatpush1.bf16.msra.mxu0 %v723
    %733 = vmatprep.subr.bf16.mxu0 0
    %734 = vmatpush1.bf16.msra.mxu0 0
    %735 = vmatprep.subr.bf16.mxu0 0
    %736 = vmatpush1.bf16.msra.mxu0 0
    %737 = vmatprep.subr.bf16.mxu0 0
    %738 = vmatpush1.bf16.msra.mxu0 0
    %739 = vmatprep.subr.bf16.mxu0 0
    %740 = vmatpush1.bf16.msra.mxu0 0
    %741 = vmatprep.subr.bf16.mxu0 0
    %742 = vmatpush1.bf16.msra.mxu0 0
    %743 = vmatprep.subr.bf16.mxu0 0
    %744 = vmatpush1.bf16.msra.mxu0 0
    %745 = vmatprep.subr.bf16.mxu0 0
    %746 = vmatpush1.bf16.msra.mxu0 0
    %747 = vmatprep.subr.bf16.mxu0 0
    %748 = vmatpush1.bf16.msra.mxu0 0
    %749 = vmatprep.subr.bf16.mxu0 0
    %750 = vmatpush1.bf16.msra.mxu0 0
    %751 = vmatprep.subr.bf16.mxu0 0
    %752 = vmatpush1.bf16.msra.mxu0 0
    %753 = vmatprep.subr.bf16.mxu0 0
    %754 = vmatpush1.bf16.msra.mxu0 0
    %755 = vmatprep.subr.bf16.mxu0 0
    %756 = vmatpush1.bf16.msra.mxu0 0
    %757 = vmatprep.subr.bf16.mxu0 0
    %758 = vmatpush1.bf16.msra.mxu0 0
    %759 = vmatprep.subr.bf16.mxu0 0
    %760 = vmatpush1.bf16.msra.mxu0 0
    %761 = vmatprep.mubr.bf16.mxu0 0
    %762 = vmatmul.mubr.bf16.gmra.mrb[0].mxu0 %v727
    %v763 = vpop.f32.mrb[0].mxu0
    %v764 = vadd.f32 %v712, %v763
    %v765 = vpop.f32.mrb[0].mxu0
    %v766 = vpop.f32.mrb[0].mxu0
    %v767 = vadd.f32 %v712, %v766
    %v768 = vpop.f32.mrb[0].mxu0
    %769 = vdwg.mxu0
    %v770 = vadd.f32 %v88, %v764
    %v771 = vadd.f32 %v89, %v767
    %v772 = vld [vmem:[#allocation7] sm:$0x1]
    %v773 = vmul.f32 %v770, %v770
    %v774 = vmul.f32 %v771, %v771
    %v775 = vsel %vm93, %v773, 0.0
    %776 = vadd.xlane.f32.xlu0 %v775
    %v777 = vpop.xlane.xlu0 %776
    %v778 = vsel %vm93, %v774, 0.0
    %779 = vadd.xlane.f32.xlu0 %v778
    %v780 = vpop.xlane.xlu0 %779
    %v781 = vmul.f32 %v777, %v100
    %v782 = vmul.f32 %v780, %v100
    %v783 = vadd.f32 %v781, 1e-06
    %v784 = vadd.f32 %v782, 1e-06
    %v785 = vrsqrt.pop %v783
    %v786 = vrsqrt.pop %v784
    %v787 = vmul.f32 %v770, %v785
    %v788 = vmul.f32 %v771, %v786
    %v790 = vlaneseq
    %v791 = vshrl.u32 %v790, 7
    %v792 = vsub.s32 0, %v791
    %v793 = vrot.slane %v772, %v792
    %v795 = vmul.f32 %v787, %v793
    %v796 = vmul.f32 %v788, %v793
    %v797 = vpack.c.bf16 %v796, %v795
    %v798 = vld [vmem:[#allocation8] sm:$0xf]
    %v799 = vld [vmem:[#allocation8 + $0x4] sm:$0xf]
    %v800 = vld [vmem:[#allocation8 + $0x8] sm:$0xf]
    %v801 = vld [vmem:[#allocation8 + $0xc] sm:$0xf]
    %v806 = vunpack.c.l.b16 %v798
    %v807 = vunpack.c.l.b16 %v799
    %v808 = vunpack.c.l.b16 %v800
    %v809 = vunpack.c.l.b16 %v801
    %v810 = vpack.c.b16 %v807, %v806
    %v811 = vpack.c.b16 %v809, %v808
    %v815 = vsel %vm93, %v797, 0
    %817 = vmatprep.subr.bf16.mxu0 0
    %818 = vmatpush1.bf16.msra.mxu0 %v810
    %819 = vmatprep.subr.bf16.mxu0 0
    %820 = vmatpush1.bf16.msra.mxu0 %v811
    %821 = vmatprep.subr.bf16.mxu0 0
    %822 = vmatpush1.bf16.msra.mxu0 0
    %823 = vmatprep.subr.bf16.mxu0 0
    %824 = vmatpush1.bf16.msra.mxu0 0
    %825 = vmatprep.subr.bf16.mxu0 0
    %826 = vmatpush1.bf16.msra.mxu0 0
    %827 = vmatprep.subr.bf16.mxu0 0
    %828 = vmatpush1.bf16.msra.mxu0 0
    %829 = vmatprep.subr.bf16.mxu0 0
    %830 = vmatpush1.bf16.msra.mxu0 0
    %831 = vmatprep.subr.bf16.mxu0 0
    %832 = vmatpush1.bf16.msra.mxu0 0
    %833 = vmatprep.subr.bf16.mxu0 0
    %834 = vmatpush1.bf16.msra.mxu0 0
    %835 = vmatprep.subr.bf16.mxu0 0
    %836 = vmatpush1.bf16.msra.mxu0 0
    %837 = vmatprep.subr.bf16.mxu0 0
    %838 = vmatpush1.bf16.msra.mxu0 0
    %839 = vmatprep.subr.bf16.mxu0 0
    %840 = vmatpush1.bf16.msra.mxu0 0
    %841 = vmatprep.subr.bf16.mxu0 0
    %842 = vmatpush1.bf16.msra.mxu0 0
    %843 = vmatprep.subr.bf16.mxu0 0
    %844 = vmatpush1.bf16.msra.mxu0 0
    %845 = vmatprep.subr.bf16.mxu0 0
    %846 = vmatpush1.bf16.msra.mxu0 0
    %847 = vmatprep.subr.bf16.mxu0 0
    %848 = vmatpush1.bf16.msra.mxu0 0
    %849 = vmatprep.mubr.bf16.mxu0 0
    %850 = vmatmul.mubr.bf16.gmra.mrb[0].mxu0 %v815
    %v851 = vpop.f32.mrb[0].mxu0
    %v852 = vadd.f32 0.0, %v851
    %v853 = vpop.f32.mrb[0].mxu0
    %v854 = vpop.f32.mrb[0].mxu0
    %v855 = vadd.f32 0.0, %v854
    %v856 = vpop.f32.mrb[0].mxu0
    %857 = vdwg.mxu0
    %v858 = vxor.u32 %v852, 2147483648
    %v859 = vxor.u32 %v855, 2147483648
    %v860 = vmul.f32 %v858, 1.442695
    %v861 = vpow.pop %v860
    %v862 = vmul.f32 %v859, 1.442695
    %v863 = vpow.pop %v862
    %v864 = vadd.f32 %v861, 1.0
    %v865 = vadd.f32 %v863, 1.0
    %v866 = vrcp.pop %v864
    %v867 = vmul.f32 1.0, %v866
    %v868 = vrcp.pop %v865
    %v869 = vmul.f32 1.0, %v868
    %v870 = vmul.f32 %v852, %v867
    %v871 = vmul.f32 %v855, %v869
    %874 = vrot.lane.b32.xlu0 %v852, 64
    %v875 = vpop.permute.xlu0 %874
    %876 = vrot.lane.b32.xlu0 %v855, 64
    %v877 = vpop.permute.xlu0 %876
    %v880 = vmul.f32 %v870, %v875
    %v881 = vmul.f32 %v871, %v877
    %v882 = vpack.c.bf16 %v881, %v880
    %v883 = vld [vmem:[%s8] sm:$0xf]
    %v884 = vld [vmem:[%s8 + $0x4] sm:$0xf]
    %v885 = vld [vmem:[%s8 + $0x8] sm:$0xf]
    %v886 = vld [vmem:[%s8 + $0xc] sm:$0xf]
    %v887 = vld [vmem:[%s8 + $0x10] sm:$0xf]
    %v888 = vld [vmem:[%s8 + $0x14] sm:$0xf]
    %v889 = vld [vmem:[%s8 + $0x18] sm:$0xf]
    %v890 = vld [vmem:[%s8 + $0x1c] sm:$0xf]
    %v899 = vunpack.c.l.b16 %v883
    %v900 = vunpack.c.l.b16 %v884
    %v901 = vunpack.c.l.b16 %v885
    %v902 = vunpack.c.l.b16 %v886
    %v903 = vunpack.c.l.b16 %v887
    %v904 = vunpack.c.l.b16 %v888
    %v905 = vunpack.c.l.b16 %v889
    %v906 = vunpack.c.l.b16 %v890
    %v907 = vpack.c.b16 %v900, %v899
    %v908 = vpack.c.b16 %v902, %v901
    %v909 = vpack.c.b16 %v904, %v903
    %v910 = vpack.c.b16 %v906, %v905
    %vm915 = vcmask 523264
    %v917 = vsel %vm915, %v882, 0
    %919 = vmatprep.subr.bf16.mxu0 0
    %920 = vmatpush1.bf16.msra.mxu0 %v907
    %921 = vmatprep.subr.bf16.mxu0 0
    %922 = vmatpush1.bf16.msra.mxu0 %v908
    %923 = vmatprep.subr.bf16.mxu0 0
    %924 = vmatpush1.bf16.msra.mxu0 %v909
    %925 = vmatprep.subr.bf16.mxu0 0
    %926 = vmatpush1.bf16.msra.mxu0 %v910
    %927 = vmatprep.subr.bf16.mxu0 0
    %928 = vmatpush1.bf16.msra.mxu0 0
    %929 = vmatprep.subr.bf16.mxu0 0
    %930 = vmatpush1.bf16.msra.mxu0 0
    %931 = vmatprep.subr.bf16.mxu0 0
    %932 = vmatpush1.bf16.msra.mxu0 0
    %933 = vmatprep.subr.bf16.mxu0 0
    %934 = vmatpush1.bf16.msra.mxu0 0
    %935 = vmatprep.subr.bf16.mxu0 0
    %936 = vmatpush1.bf16.msra.mxu0 0
    %937 = vmatprep.subr.bf16.mxu0 0
    %938 = vmatpush1.bf16.msra.mxu0 0
    %939 = vmatprep.subr.bf16.mxu0 0
    %940 = vmatpush1.bf16.msra.mxu0 0
    %941 = vmatprep.subr.bf16.mxu0 0
    %942 = vmatpush1.bf16.msra.mxu0 0
    %943 = vmatprep.subr.bf16.mxu0 0
    %944 = vmatpush1.bf16.msra.mxu0 0
    %945 = vmatprep.subr.bf16.mxu0 0
    %946 = vmatpush1.bf16.msra.mxu0 0
    %947 = vmatprep.subr.bf16.mxu0 0
    %948 = vmatpush1.bf16.msra.mxu0 0
    %949 = vmatprep.subr.bf16.mxu0 0
    %950 = vmatpush1.bf16.msra.mxu0 0
    %951 = vmatprep.mubr.bf16.mxu0 0
    %952 = vmatmul.mubr.bf16.gmra.mrb[0].mxu0 %v917
    %v953 = vpop.f32.mrb[0].mxu0
    %v954 = vadd.f32 0.0, %v953
    %v955 = vpop.f32.mrb[0].mxu0
    %v956 = vpop.f32.mrb[0].mxu0
    %v957 = vadd.f32 0.0, %v956
    %v958 = vpop.f32.mrb[0].mxu0
    %959 = vdwg.mxu0
    %v960 = vadd.f32 %v770, %v954
    %v961 = vadd.f32 %v771, %v957
    %962 = vst.msk [vmem:[#allocation10] sm:$0xff] %vm93, %v960
    %963 = vst.msk [vmem:[#allocation10 + $0x8] sm:$0xff] %vm93, %v961
    // Predicated region
    $region58: #{block_forward.1} parent=1 // pred_check
      _
    $region59: #{block_forward.1} parent=1 // pred_check_branch
      %965 = sbr.rel (0) target = $region61
    $region60: #{block_forward.1} parent=1 // pred_region
      %s967 = ssub.s32 256, 256
      %968 = vsyncadd [#allocation4], %s967
      %s969 = sshll.u32 [#allocation10], 4
      %s970 = int_to_ptr.vmem [resolvable:$true] %s969
      %975 = dma.vmem_to_hbm [thread:$0]  %s970, 256, %s10, [#allocation4], 128, 128, 8
    $region61: #{block_forward.1} parent=1 // pred_fallthru
      _
    // Predicated region
    $region62: #{block_forward.1} parent=1 // pred_check
      _
    $region63: #{block_forward.1} parent=1 // pred_check_branch
      %977 = sbr.rel (0) target = $region65
    $region64: #{block_forward.1} parent=1 // pred_region
      %978 = dma.done [#allocation4], 256
    $region65: #{block_forward.1} parent=1 // pred_fallthru
      _
    %979 = vsyncpa [#allocation3], 1
    %980 = vsyncpa [#allocation6], 1
    %981 = vsyncpa [#allocation9], 1
    %982 = vsyncpa [#allocation4], 1

</llo_original>
